<compile_context>
chip_gen: v7x
topology: tpu7x:2x2x1
jax: 0.10.0
libtpu: 0.0.40
codegen_flags: <defaults>
</compile_context>

<pallas_src>
import jax
import jax.numpy as jnp
from jax.experimental import pallas as pl
from jax.experimental.pallas import tpu as pltpu


# ----------------------------- budgets & tiles -----------------------------

def _vmem_budget():
    """~85% of this generation's physical VMEM (v5e/v6e: 128 MiB, v7x: 64 MiB)."""
    cap = 64 << 20   # conservative (v7x-sized) fallback
    try:
        info = pltpu.get_tpu_info()
        cap = int(getattr(info, "vmem_capacity_bytes", cap) or cap)
    except Exception:
        pass
    return int(cap * 0.85)


def _choose_att_tile(C, P, D, x_itemsize, budget):
    """Column tile TD for kernel 1 (the in-kernel attT tile is (TD, D) f32)."""
    if D <= 512 or D % 128 != 0:
        # Full-D fallback (always shape-legal).
        # TODO(synk): D > 512 with no 128-multiple divisor needs j-axis padding
        # + masking (or an i-tiled two-pass softmax) before it can be tiled.
        return D

    fixed = (2 * P * D * 2                 # resident t block (bf16, double-buffered)
             + 2 * C * D * 2               # resident z output block (bf16, dbuf)
             + P * D * 4                   # y accumulator scratch (f32)
             + 2 * (2 * P * C + C * P) * 2 # bf16 weight blocks, double-buffered
             + 2 * 2 * C * 4)              # stats output blocks

    def need(td):
        return fixed + (2 * C * td * x_itemsize   # x column tile (double-buffered)
                        + td * D * 10             # attT f32 + exp f32 + bf16 copy
                        + 2 * P * td * 6          # pg f32 + p/g bf16 copies
                        + C * td * 4)             # finalize (C, td) f32 chunk

    hi = (min(D, 2048) // 128) * 128
    for td in range(hi, 0, -128):
        if D % td == 0 and need(td) <= budget:
            return td
    return 128   # best effort; i-axis tiling is out of scope here


def _choose_bn_tile(C, D, x_itemsize, o_itemsize, budget, target=1024):
    """Spatial tile for the mem-bound elementwise BN + residual kernel."""
    if D <= target or D % 128 != 0:
        return D
    per_col = 2 * C * (2 + x_itemsize + o_itemsize)   # z + x + out, double-buffered
    fixed = 2 * 2 * C * 128 * 4                       # scale / bias blocks
    hi = (min(D, target) // 128) * 128
    for td in range(hi, 0, -128):
        if D % td == 0 and fixed + per_col * td <= budget:
            return td
    return D


# ------------------------------- kernel 1 ----------------------------------

def _spatial_nl_attn_kernel(t_ref, x_ref, wpg_ref, wz_ref,
                            z_ref, zsum_ref, zsq_ref, y_ref):
    j = pl.program_id(1)

    @pl.when(j == 0)
    def _init():
        y_ref[...] = jnp.zeros_like(y_ref)

    # Fused p/g projections on this column tile: (2P, C) x (C, TD),
    # bf16 MXU operands / f32 accumulation.
    xt = x_ref[0].astype(jnp.bfloat16)                               # (C, TD)
    pg = jnp.dot(wpg_ref[...], xt, preferred_element_type=jnp.float32)
    planes = pg.shape[0] // 2
    p = pg[:planes].astype(jnp.bfloat16)                             # (P, TD)
    g = pg[planes:].astype(jnp.bfloat16)                             # (P, TD)

    # attT[jj, i] = sum_c p[c, jj] * t[c, i]  -> (TD, D); bf16 in / f32 acc.
    # (The optional 1/sqrt(planes) attention scale is pre-folded into t.)
    attT = jax.lax.dot_general(p, t_ref[0], (((0,), (0,)), ((), ())),
                               preferred_element_type=jnp.float32)

    # nn.Softmax(dim=1) on att[b, i, j]  ==  softmax over i == LAST axis here
    # (lane reductions; the full i range is resident so the softmax is exact).
    m = jnp.max(attT, axis=-1, keepdims=True)
    e = jnp.exp(attT - m)
    s = jnp.sum(e, axis=-1, keepdims=True)
    # Normalization stays applied to e: folding 1/s into g's columns would need
    # a (TD, 1) -> (1, TD) sublane->lane relayout; this multiply hides under
    # the EUP exp / MXU work anyway.
    a = (e * pl.reciprocal(s, approx=True)).astype(jnp.bfloat16)     # (TD, D)

    # y[c, i] += sum_jj g[c, jj] * a[jj, i]  -- canonical MXU matmul.
    y_ref[...] += jnp.dot(g, a, preferred_element_type=jnp.float32)

    @pl.when(j == pl.num_programs(1) - 1)
    def _finalize():
        # z = Wz @ y, chunked over D so the f32 temporary stays (C, chunk);
        # also emit per-(batch, channel) stats so BN never re-reads z from HBM.
        d = y_ref.shape[1]
        td = x_ref.shape[2]
        C = z_ref.shape[1]
        zs = jnp.zeros((C, 1), jnp.float32)
        zq = jnp.zeros((C, 1), jnp.float32)
        for c0 in range(0, d, td):                                   # static unroll
            yb = y_ref[:, c0:c0 + td].astype(jnp.bfloat16)           # (P, td)
            zc = jnp.dot(wz_ref[...], yb,
                         preferred_element_type=jnp.float32)         # (C, td)
            z_ref[0, :, c0:c0 + td] = zc.astype(z_ref.dtype)
            zs = zs + jnp.sum(zc, axis=-1, keepdims=True)
            zq = zq + jnp.sum(zc * zc, axis=-1, keepdims=True)
        zsum_ref[0] = zs
        zsq_ref[0] = zq


# ------------------------------- kernel 2 ----------------------------------

def _bn_apply_kernel(z_ref, x_ref, scale_ref, bias_ref, o_ref):
    # out = z * scale + bias + residual, tiled over (B, D); purely elementwise.
    scale = scale_ref[:, 0:1]                                        # (C, 1)
    bias = bias_ref[:, 0:1]                                          # (C, 1)
    z = z_ref[0].astype(jnp.float32)                                 # (C, TDBN)
    res = x_ref[0].astype(jnp.float32)
    o_ref[0] = (z * scale + bias + res).astype(o_ref.dtype)


# -------------------------------- wrapper -----------------------------------

def spatial_nl(x, wt, wp, wg, wz, gamma, beta, *, use_scale=False, eps=1e-5):
    B, C, D = x.shape
    P = wt.shape[0]
    out_dtype = x.dtype

    # Tiny t projection (plus the optional 1/sqrt(planes) scale) done once in
    # the wrapper; kernel 1 then keeps a bf16 (P, D) block resident per batch
    # instead of a second full (C, D) f32 copy of x.
    t = jnp.einsum('pc,bcd->bpd', wt.astype(jnp.float32), x.astype(jnp.float32))
    if use_scale:
        t = t * (1.0 / float(P) ** 0.5)
    t = t.astype(jnp.bfloat16)

    wpg = jnp.concatenate([wp, wg], axis=0).astype(jnp.bfloat16)     # (2P, C)
    wz_b = wz.astype(jnp.bfloat16)                                   # (C, P)

    budget = _vmem_budget()
    x_bytes = jnp.dtype(x.dtype).itemsize
    TD = _choose_att_tile(C, P, D, x_bytes, budget)
    NJ = D // TD

    z, zsum, zsq = pl.pallas_call(
        _spatial_nl_attn_kernel,
        out_shape=(jax.ShapeDtypeStruct((B, C, D), jnp.bfloat16),    # z (bf16)
                   jax.ShapeDtypeStruct((B, C, 1), jnp.float32),     # sum(z)
                   jax.ShapeDtypeStruct((B, C, 1), jnp.float32)),    # sum(z^2)
        grid_spec=pltpu.PrefetchScalarGridSpec(
            num_scalar_prefetch=0,
            grid=(B, NJ),
            in_specs=[
                pl.BlockSpec((1, P, D), lambda b, j: (b, 0, 0)),     # t (resident)
                pl.BlockSpec((1, C, TD), lambda b, j: (b, 0, j)),    # x column tile
                pl.BlockSpec((2 * P, C), lambda b, j: (0, 0)),       # Wp|Wg fused
                pl.BlockSpec((C, P), lambda b, j: (0, 0)),           # Wz
            ],
            out_specs=[
                pl.BlockSpec((1, C, D), lambda b, j: (b, 0, 0)),
                pl.BlockSpec((1, C, 1), lambda b, j: (b, 0, 0)),
                pl.BlockSpec((1, C, 1), lambda b, j: (b, 0, 0)),
            ],
            scratch_shapes=[pltpu.VMEM((P, D), jnp.float32)]),       # y accumulator
        compiler_params=pltpu.CompilerParams(
            dimension_semantics=("parallel", "arbitrary"),
            vmem_limit_bytes=budget),
    )(t, x, wpg, wz_b)

    # Training-mode BatchNorm1d: biased batch statistics over (B, D) per
    # channel, reduced from the per-batch partial sums emitted by kernel 1.
    n = float(B * D)
    total = jnp.sum(zsum[:, :, 0], axis=0)                           # (C,)
    total_sq = jnp.sum(zsq[:, :, 0], axis=0)                         # (C,)
    mean = total / n
    var = jnp.maximum(total_sq / n - mean * mean, 0.0)
    scale = gamma.astype(jnp.float32) * jax.lax.rsqrt(var + eps)
    bias = beta.astype(jnp.float32) - mean * scale
    # Lane-dense per-channel scale/bias blocks (avoid size-1 lane layouts).
    scale_l = jnp.broadcast_to(scale[:, None], (C, 128))
    bias_l = jnp.broadcast_to(bias[:, None], (C, 128))

    o_bytes = jnp.dtype(out_dtype).itemsize
    TDBN = _choose_bn_tile(C, D, x_bytes, o_bytes, budget)
    NJBN = D // TDBN

    out = pl.pallas_call(
        _bn_apply_kernel,
        out_shape=jax.ShapeDtypeStruct((B, C, D), out_dtype),
        grid_spec=pltpu.PrefetchScalarGridSpec(
            num_scalar_prefetch=0,
            grid=(B, NJBN),
            in_specs=[
                pl.BlockSpec((1, C, TDBN), lambda b, j: (b, 0, j)),  # z (bf16)
                pl.BlockSpec((1, C, TDBN), lambda b, j: (b, 0, j)),  # residual x
                pl.BlockSpec((C, 128), lambda b, j: (0, 0)),         # scale
                pl.BlockSpec((C, 128), lambda b, j: (0, 0)),         # bias
            ],
            out_specs=pl.BlockSpec((1, C, TDBN), lambda b, j: (b, 0, j))),
        compiler_params=pltpu.CompilerParams(
            dimension_semantics=("parallel", "parallel"),
            vmem_limit_bytes=budget),
    )(z, x, scale_l, bias_l)
    return out


# ------------------------------- reference ----------------------------------

def spatial_nl_reference(x, wt, wp, wg, wz, gamma, beta,
                         *, use_scale=False, eps=1e-5):
    """Plain-JAX (f32) reference mirroring the PyTorch forward."""
    x = x.astype(jnp.float32)
    t = jnp.einsum('pc,bcd->bpd', wt, x)
    p = jnp.einsum('pc,bcd->bpd', wp, x)
    g = jnp.einsum('pc,bcd->bpd', wg, x)
    att = jnp.einsum('bpi,bpj->bij', t, p)             # bmm(t^T, p)
    if use_scale:
        att = att / jnp.sqrt(jnp.float32(t.shape[1]))
    att = jax.nn.softmax(att, axis=1)                  # nn.Softmax(dim=1)
    y = jnp.einsum('bik,bpk->bpi', att, g)             # bmm(att, g^T), permuted
    z = jnp.einsum('cp,bpd->bcd', wz, y)
    mean = jnp.mean(z, axis=(0, 2), keepdims=True)
    var = jnp.mean(jnp.square(z - mean), axis=(0, 2), keepdims=True)
    norm = (z - mean) / jnp.sqrt(var + eps)
    return gamma.reshape(1, -1, 1) * norm + beta.reshape(1, -1, 1) + x


if __name__ == "__main__":
    B, C_IN, PLANES, D = 2, 4, 2, 16   # batch, inplanes, planes, spatial length

    key = jax.random.PRNGKey(0)
    kx, kt, kp, kg, kz = jax.random.split(key, 5)

    x = jax.random.normal(kx, (B, C_IN, D), dtype=jnp.float32)
    wt = jax.random.normal(kt, (PLANES, C_IN), dtype=jnp.float32) * 0.25
    wp = jax.random.normal(kp, (PLANES, C_IN), dtype=jnp.float32) * 0.25
    wg = jax.random.normal(kg, (PLANES, C_IN), dtype=jnp.float32) * 0.25
    wz = jax.random.normal(kz, (C_IN, PLANES), dtype=jnp.float32) * 0.25
    gamma = jnp.ones((C_IN,), dtype=jnp.float32)   # fresh BatchNorm1d weight
    beta = jnp.zeros((C_IN,), dtype=jnp.float32)   # fresh BatchNorm1d bias

    fwd = jax.jit(spatial_nl, static_argnames=("use_scale", "eps"))
    out = jax.block_until_ready(
        fwd(x, wt, wp, wg, wz, gamma, beta, use_scale=False, eps=1e-5))

    ref = spatial_nl_reference(x, wt, wp, wg, wz, gamma, beta,
                               use_scale=False, eps=1e-5)
    assert out.shape == (B, C_IN, D)
    # Tolerance vs the all-f32 reference: every matmul uses bf16 MXU operands,
    # z is stored bf16, the softmax uses an approximate reciprocal, and the
    # training-mode BatchNorm divides by the per-channel batch std, which
    # amplifies those rounding errors on low-variance channels.
    max_err = float(jnp.max(jnp.abs(out - ref)))
    assert jnp.allclose(out, ref, rtol=1e-1, atol=1e-1), (
        "mismatch vs reference (max abs err %.4f)" % max_err)

    print("KERNEL_OK")
</pallas_src>

<mosaic_0001>
module attributes {stable_mosaic.version = 11 : i64} {
  func.func @_bn_apply_kernel(%arg0: i32, %arg1: i32, %arg2: memref<1x4x16xbf16, #tpu.memory_space<vmem>>, %arg3: memref<1x4x16xf32, #tpu.memory_space<vmem>>, %arg4: memref<4x128xf32, #tpu.memory_space<vmem>>, %arg5: memref<4x128xf32, #tpu.memory_space<vmem>>, %arg6: memref<1x4x16xf32, #tpu.memory_space<vmem>>) attributes {dimension_semantics = [#tpu.dimension_semantics<parallel>, #tpu.dimension_semantics<parallel>], iteration_bounds = array<i64: 2, 1>, scalar_prefetch = 0 : i64, scratch_operands = 0 : i64, tpu.core_type = #tpu.core_type<tc>, window_params = [{transform_indices = @transform_0, window_bounds = array<i64: 1, 4, 16>}, {transform_indices = @transform_1, window_bounds = array<i64: 1, 4, 16>}, {pipeline_mode = #tpu.pipeline_mode<synchronous>, transform_indices = @transform_2, window_bounds = array<i64: 4, 128>}, {pipeline_mode = #tpu.pipeline_mode<synchronous>, transform_indices = @transform_3, window_bounds = array<i64: 4, 128>}, {transform_indices = @transform_4, window_bounds = array<i64: 1, 4, 16>}]} {
    %c0 = arith.constant 0 : index
    %c0_0 = arith.constant 0 : index
    %0 = vector.load %arg4[%c0, %c0_0] : memref<4x128xf32, #tpu.memory_space<vmem>>, vector<4x1xf32>
    %c0_1 = arith.constant 0 : index
    %c0_2 = arith.constant 0 : index
    %1 = vector.load %arg5[%c0_1, %c0_2] : memref<4x128xf32, #tpu.memory_space<vmem>>, vector<4x1xf32>
    %c0_3 = arith.constant 0 : index
    %c0_4 = arith.constant 0 : index
    %c0_5 = arith.constant 0 : index
    %2 = vector.load %arg2[%c0_3, %c0_4, %c0_5] : memref<1x4x16xbf16, #tpu.memory_space<vmem>>, vector<1x4x16xbf16>
    %3 = vector.shape_cast %2 : vector<1x4x16xbf16> to vector<4x16xbf16>
    %4 = arith.extf %3 : vector<4x16xbf16> to vector<4x16xf32>
    %c0_6 = arith.constant 0 : index
    %c0_7 = arith.constant 0 : index
    %c0_8 = arith.constant 0 : index
    %5 = vector.load %arg3[%c0_6, %c0_7, %c0_8] : memref<1x4x16xf32, #tpu.memory_space<vmem>>, vector<1x4x16xf32>
    %6 = vector.shape_cast %5 : vector<1x4x16xf32> to vector<4x16xf32>
    %7 = vector.broadcast %0 : vector<4x1xf32> to vector<4x16xf32>
    %8 = arith.mulf %4, %7 : vector<4x16xf32>
    %9 = vector.broadcast %1 : vector<4x1xf32> to vector<4x16xf32>
    %10 = arith.addf %8, %9 : vector<4x16xf32>
    %11 = arith.addf %10, %6 : vector<4x16xf32>
    %c0_9 = arith.constant 0 : index
    %c0_10 = arith.constant 0 : index
    %c0_11 = arith.constant 0 : index
    %12 = vector.load %arg6[%c0_9, %c0_10, %c0_11] : memref<1x4x16xf32, #tpu.memory_space<vmem>>, vector<1x4x16xf32>
    %13 = vector.shape_cast %12 : vector<1x4x16xf32> to vector<4x16xf32>
    %14 = vector.shape_cast %11 : vector<4x16xf32> to vector<1x4x16xf32>
    tpu.vector_store %arg6[%c0_9, %c0_10, %c0_11], %14 {strides = array<i32>} : memref<1x4x16xf32, #tpu.memory_space<vmem>>, vector<1x4x16xf32>,
    return
  }
  func.func @transform_0(%arg0: i32, %arg1: i32) -> (i32, i32, i32) {
    %c0_i32 = arith.constant 0 : i32
    %c0_i32_0 = arith.constant 0 : i32
    return %arg0, %c0_i32, %arg1 : i32, i32, i32
  }
  func.func @transform_1(%arg0: i32, %arg1: i32) -> (i32, i32, i32) {
    %c0_i32 = arith.constant 0 : i32
    %c0_i32_0 = arith.constant 0 : i32
    return %arg0, %c0_i32, %arg1 : i32, i32, i32
  }
  func.func @transform_2(%arg0: i32, %arg1: i32) -> (i32, i32) {
    %c0_i32 = arith.constant 0 : i32
    %c0_i32_0 = arith.constant 0 : i32
    %c0_i32_1 = arith.constant 0 : i32
    return %c0_i32, %c0_i32_0 : i32, i32
  }
  func.func @transform_3(%arg0: i32, %arg1: i32) -> (i32, i32) {
    %c0_i32 = arith.constant 0 : i32
    %c0_i32_0 = arith.constant 0 : i32
    %c0_i32_1 = arith.constant 0 : i32
    return %c0_i32, %c0_i32_0 : i32, i32
  }
  func.func @transform_4(%arg0: i32, %arg1: i32) -> (i32, i32, i32) {
    %c0_i32 = arith.constant 0 : i32
    %c0_i32_0 = arith.constant 0 : i32
    return %arg0, %c0_i32, %arg1 : i32, i32, i32
  }
}

module attributes {stable_mosaic.version = 11 : i64} {
  func.func @_spatial_nl_attn_kernel(%arg0: i32, %arg1: i32, %arg2: memref<1x2x16xbf16, #tpu.memory_space<vmem>>, %arg3: memref<1x4x16xf32, #tpu.memory_space<vmem>>, %arg4: memref<4x4xbf16, #tpu.memory_space<vmem>>, %arg5: memref<4x2xbf16, #tpu.memory_space<vmem>>, %arg6: memref<1x4x16xbf16, #tpu.memory_space<vmem>>, %arg7: memref<1x4x1xf32, #tpu.memory_space<vmem>>, %arg8: memref<1x4x1xf32, #tpu.memory_space<vmem>>, %arg9: memref<2x16xf32, #tpu.memory_space<vmem>>) attributes {dimension_semantics = [#tpu.dimension_semantics<parallel>, #tpu.dimension_semantics<arbitrary>], iteration_bounds = array<i64: 2, 1>, scalar_prefetch = 0 : i64, scratch_operands = 1 : i64, tpu.core_type = #tpu.core_type<tc>, window_params = [{transform_indices = @transform_0, window_bounds = array<i64: 1, 2, 16>}, {transform_indices = @transform_1, window_bounds = array<i64: 1, 4, 16>}, {pipeline_mode = #tpu.pipeline_mode<synchronous>, transform_indices = @transform_2, window_bounds = array<i64: 4, 4>}, {pipeline_mode = #tpu.pipeline_mode<synchronous>, transform_indices = @transform_3, window_bounds = array<i64: 4, 2>}, {transform_indices = @transform_4, window_bounds = array<i64: 1, 4, 16>}, {transform_indices = @transform_5, window_bounds = array<i64: 1, 4, 1>}, {transform_indices = @transform_6, window_bounds = array<i64: 1, 4, 1>}]} {
    %c0_i32 = arith.constant 0 : i32
    %0 = arith.cmpi eq, %arg1, %c0_i32 : i32
    %1 = arith.extui %0 : i1 to i32
    %c0_i32_0 = arith.constant 0 : i32
    %2 = arith.cmpi ne, %1, %c0_i32_0 : i32
    scf.if %2 {
      %cst_18 = arith.constant 0.000000e+00 : f32
      %33 = vector.broadcast %cst_18 : f32 to vector<2x16xf32>
      %c0_19 = arith.constant 0 : index
      %c0_20 = arith.constant 0 : index
      %34 = vector.load %arg9[%c0_19, %c0_20] : memref<2x16xf32, #tpu.memory_space<vmem>>, vector<2x16xf32>
      tpu.vector_store %arg9[%c0_19, %c0_20], %33 {strides = array<i32>} : memref<2x16xf32, #tpu.memory_space<vmem>>, vector<2x16xf32>,
    } else {
    }
    %c0 = arith.constant 0 : index
    %c0_1 = arith.constant 0 : index
    %c0_2 = arith.constant 0 : index
    %3 = vector.load %arg3[%c0, %c0_1, %c0_2] : memref<1x4x16xf32, #tpu.memory_space<vmem>>, vector<1x4x16xf32>
    %4 = vector.shape_cast %3 : vector<1x4x16xf32> to vector<4x16xf32>
    %5 = arith.truncf %4 : vector<4x16xf32> to vector<4x16xbf16>
    %c0_3 = arith.constant 0 : index
    %c0_4 = arith.constant 0 : index
    %6 = vector.load %arg4[%c0_3, %c0_4] : memref<4x4xbf16, #tpu.memory_space<vmem>>, vector<4x4xbf16>
    %cst = arith.constant dense<0.000000e+00> : vector<4x16xf32>
    %7 = tpu.matmul %6, %5, %cst {dimension_numbers = #tpu.dot_dimension_numbers<[1], [0], [0], [1], [0, 0, 1, 1], [], []>} : vector<4x4xbf16>, vector<4x16xbf16>, vector<4x16xf32> -> vector<4x16xf32>
    %8 = vector.extract_strided_slice %7 {offsets = [0, 0], sizes = [2, 16], strides = [1, 1]} : vector<4x16xf32> to vector<2x16xf32>
    %9 = arith.truncf %8 : vector<2x16xf32> to vector<2x16xbf16>
    %10 = vector.extract_strided_slice %7 {offsets = [2, 0], sizes = [2, 16], strides = [1, 1]} : vector<4x16xf32> to vector<2x16xf32>
    %11 = arith.truncf %10 : vector<2x16xf32> to vector<2x16xbf16>
    %c0_5 = arith.constant 0 : index
    %c0_6 = arith.constant 0 : index
    %c0_7 = arith.constant 0 : index
    %12 = vector.load %arg2[%c0_5, %c0_6, %c0_7] : memref<1x2x16xbf16, #tpu.memory_space<vmem>>, vector<1x2x16xbf16>
    %13 = vector.shape_cast %12 : vector<1x2x16xbf16> to vector<2x16xbf16>
    %cst_8 = arith.constant dense<0.000000e+00> : vector<16x16xf32>
    %14 = tpu.matmul %9, %13, %cst_8 {dimension_numbers = #tpu.dot_dimension_numbers<[0], [0], [1], [1], [0, 1, 1, 1], [], []>} : vector<2x16xbf16>, vector<2x16xbf16>, vector<16x16xf32> -> vector<16x16xf32>
    %cst_9 = arith.constant dense<0xFF800000> : vector<16xf32>
    %15 = vector.multi_reduction <maximumf>, %14, %cst_9 [1] : vector<16x16xf32> to vector<16xf32>
    %16 = vector.shape_cast %15 : vector<16xf32> to vector<16x1xf32>
    %17 = vector.broadcast %16 : vector<16x1xf32> to vector<16x16xf32>
    %18 = arith.subf %14, %17 : vector<16x16xf32>
    %19 = math.exp %18 : vector<16x16xf32>
    %cst_10 = arith.constant dense<0.000000e+00> : vector<16xf32>
    %20 = vector.multi_reduction <add>, %19, %cst_10 [1] : vector<16x16xf32> to vector<16xf32>
    %21 = vector.shape_cast %20 : vector<16xf32> to vector<16x1xf32>
    %22 = tpu.reciprocal %21 {approx = true} : vector<16x1xf32> -> vector<16x1xf32>
    %23 = vector.broadcast %22 : vector<16x1xf32> to vector<16x16xf32>
    %24 = arith.mulf %19, %23 : vector<16x16xf32>
    %25 = arith.truncf %24 : vector<16x16xf32> to vector<16x16xbf16>
    %c0_11 = arith.constant 0 : index
    %c0_12 = arith.constant 0 : index
    %26 = vector.load %arg9[%c0_11, %c0_12] : memref<2x16xf32, #tpu.memory_space<vmem>>, vector<2x16xf32>
    %cst_13 = arith.constant dense<0.000000e+00> : vector<2x16xf32>
    %27 = tpu.matmul %11, %25, %cst_13 {dimension_numbers = #tpu.dot_dimension_numbers<[1], [0], [0], [1], [0, 0, 1, 1], [], []>} : vector<2x16xbf16>, vector<16x16xbf16>, vector<2x16xf32> -> vector<2x16xf32>
    %28 = arith.addf %26, %27 : vector<2x16xf32>
    %c0_14 = arith.constant 0 : index
    %c0_15 = arith.constant 0 : index
    %29 = vector.load %arg9[%c0_14, %c0_15] : memref<2x16xf32, #tpu.memory_space<vmem>>, vector<2x16xf32>
    tpu.vector_store %arg9[%c0_14, %c0_15], %28 {strides = array<i32>} : memref<2x16xf32, #tpu.memory_space<vmem>>, vector<2x16xf32>,
    %c0_i32_16 = arith.constant 0 : i32
    %30 = arith.cmpi eq, %arg1, %c0_i32_16 : i32
    %31 = arith.extui %30 : i1 to i32
    %c0_i32_17 = arith.constant 0 : i32
    %32 = arith.cmpi ne, %31, %c0_i32_17 : i32
    scf.if %32 {
      %cst_18 = arith.constant 0.000000e+00 : f32
      %33 = vector.broadcast %cst_18 : f32 to vector<4x1xf32>
      %cst_19 = arith.constant 0.000000e+00 : f32
      %34 = vector.broadcast %cst_19 : f32 to vector<4x1xf32>
      %c0_20 = arith.constant 0 : index
      %c0_21 = arith.constant 0 : index
      %35 = vector.load %arg9[%c0_20, %c0_21] : memref<2x16xf32, #tpu.memory_space<vmem>>, vector<2x16xf32>
      %36 = arith.truncf %35 : vector<2x16xf32> to vector<2x16xbf16>
      %c0_22 = arith.constant 0 : index
      %c0_23 = arith.constant 0 : index
      %37 = vector.load %arg5[%c0_22, %c0_23] : memref<4x2xbf16, #tpu.memory_space<vmem>>, vector<4x2xbf16>
      %cst_24 = arith.constant dense<0.000000e+00> : vector<4x16xf32>
      %38 = tpu.matmul %37, %36, %cst_24 {dimension_numbers = #tpu.dot_dimension_numbers<[1], [0], [0], [1], [0, 0, 1, 1], [], []>} : vector<4x2xbf16>, vector<2x16xbf16>, vector<4x16xf32> -> vector<4x16xf32>
      %39 = arith.truncf %38 : vector<4x16xf32> to vector<4x16xbf16>
      %c0_25 = arith.constant 0 : index
      %c0_26 = arith.constant 0 : index
      %c0_27 = arith.constant 0 : index
      %40 = vector.load %arg6[%c0_25, %c0_26, %c0_27] : memref<1x4x16xbf16, #tpu.memory_space<vmem>>, vector<1x4x16xbf16>
      %41 = vector.shape_cast %40 : vector<1x4x16xbf16> to vector<4x16xbf16>
      %42 = vector.shape_cast %39 : vector<4x16xbf16> to vector<1x4x16xbf16>
      tpu.vector_store %arg6[%c0_25, %c0_26, %c0_27], %42 {strides = array<i32>} : memref<1x4x16xbf16, #tpu.memory_space<vmem>>, vector<1x4x16xbf16>,
      %cst_28 = arith.constant dense<0.000000e+00> : vector<4xf32>
      %43 = vector.multi_reduction <add>, %38, %cst_28 [1] : vector<4x16xf32> to vector<4xf32>
      %44 = vector.shape_cast %43 : vector<4xf32> to vector<4x1xf32>
      %45 = arith.addf %33, %44 : vector<4x1xf32>
      %46 = arith.mulf %38, %38 : vector<4x16xf32>
      %cst_29 = arith.constant dense<0.000000e+00> : vector<4xf32>
      %47 = vector.multi_reduction <add>, %46, %cst_29 [1] : vector<4x16xf32> to vector<4xf32>
      %48 = vector.shape_cast %47 : vector<4xf32> to vector<4x1xf32>
      %49 = arith.addf %34, %48 : vector<4x1xf32>
      %c0_30 = arith.constant 0 : index
      %c0_31 = arith.constant 0 : index
      %c0_32 = arith.constant 0 : index
      %50 = vector.load %arg7[%c0_30, %c0_31, %c0_32] : memref<1x4x1xf32, #tpu.memory_space<vmem>>, vector<1x4x1xf32>
      %51 = vector.shape_cast %50 : vector<1x4x1xf32> to vector<4x1xf32>
      %52 = vector.shape_cast %45 : vector<4x1xf32> to vector<1x4x1xf32>
      tpu.vector_store %arg7[%c0_30, %c0_31, %c0_32], %52 {strides = array<i32>} : memref<1x4x1xf32, #tpu.memory_space<vmem>>, vector<1x4x1xf32>,
      %c0_33 = arith.constant 0 : index
      %c0_34 = arith.constant 0 : index
      %c0_35 = arith.constant 0 : index
      %53 = vector.load %arg8[%c0_33, %c0_34, %c0_35] : memref<1x4x1xf32, #tpu.memory_space<vmem>>, vector<1x4x1xf32>
      %54 = vector.shape_cast %53 : vector<1x4x1xf32> to vector<4x1xf32>
      %55 = vector.shape_cast %49 : vector<4x1xf32> to vector<1x4x1xf32>
      tpu.vector_store %arg8[%c0_33, %c0_34, %c0_35], %55 {strides = array<i32>} : memref<1x4x1xf32, #tpu.memory_space<vmem>>, vector<1x4x1xf32>,
    } else {
    }
    return
  }
  func.func @transform_0(%arg0: i32, %arg1: i32) -> (i32, i32, i32) {
    %c0_i32 = arith.constant 0 : i32
    %c0_i32_0 = arith.constant 0 : i32
    %c0_i32_1 = arith.constant 0 : i32
    return %arg0, %c0_i32, %c0_i32_0 : i32, i32, i32
  }
  func.func @transform_1(%arg0: i32, %arg1: i32) -> (i32, i32, i32) {
    %c0_i32 = arith.constant 0 : i32
    %c0_i32_0 = arith.constant 0 : i32
    return %arg0, %c0_i32, %arg1 : i32, i32, i32
  }
  func.func @transform_2(%arg0: i32, %arg1: i32) -> (i32, i32) {
    %c0_i32 = arith.constant 0 : i32
    %c0_i32_0 = arith.constant 0 : i32
    %c0_i32_1 = arith.constant 0 : i32
    return %c0_i32, %c0_i32_0 : i32, i32
  }
  func.func @transform_3(%arg0: i32, %arg1: i32) -> (i32, i32) {
    %c0_i32 = arith.constant 0 : i32
    %c0_i32_0 = arith.constant 0 : i32
    %c0_i32_1 = arith.constant 0 : i32
    return %c0_i32, %c0_i32_0 : i32, i32
  }
  func.func @transform_4(%arg0: i32, %arg1: i32) -> (i32, i32, i32) {
    %c0_i32 = arith.constant 0 : i32
    %c0_i32_0 = arith.constant 0 : i32
    %c0_i32_1 = arith.constant 0 : i32
    return %arg0, %c0_i32, %c0_i32_0 : i32, i32, i32
  }
  func.func @transform_5(%arg0: i32, %arg1: i32) -> (i32, i32, i32) {
    %c0_i32 = arith.constant 0 : i32
    %c0_i32_0 = arith.constant 0 : i32
    %c0_i32_1 = arith.constant 0 : i32
    return %arg0, %c0_i32, %c0_i32_0 : i32, i32, i32
  }
  func.func @transform_6(%arg0: i32, %arg1: i32) -> (i32, i32, i32) {
    %c0_i32 = arith.constant 0 : i32
    %c0_i32_0 = arith.constant 0 : i32
    %c0_i32_1 = arith.constant 0 : i32
    return %arg0, %c0_i32, %c0_i32_0 : i32, i32, i32
  }
}

</mosaic_0001>

<llo_original>
// kernel: spatial_nl.3
$region0: #{spatial_nl.3}
  #allocation0 [shape = 'u32[]', space=smem, size = 0x4, offset = 0x4, fixed_abs, tag = 'smem constant byte address 0x4 - core index']
  #allocation1 [shape = 'u32[144,128]{1,0:T(1,128)}', space=vmem, size = 0x12000, scoped, tag = 'internal scratch']
  %s0 = inlined_call_operand.vmem [shape: bf16[2,4,16], index: 0, kind: input, shape index: {}]
  %s1 = inlined_call_operand.vmem [shape: f32[2,4,16], index: 1, kind: input, shape index: {}]
  %s2 = inlined_call_operand.vmem [shape: f32[4,128], index: 2, kind: input, shape index: {}]
  %s3 = inlined_call_operand.vmem [shape: f32[4,128], index: 3, kind: input, shape index: {}]
  %s4 = inlined_call_operand.hbm [shape: f32[2,4,16], index: 4, kind: output, shape index: {}]
  %s5 = sld [smem:[#allocation0]]
  $region49: #{spatial_nl.3} parent=0
    _
  %s7 = ssub.s32 1, %s5
  %s8 = scalar_select 0, %s7, %s5
  $region1: #{spatial_nl.3} parent=0
    #allocation2 [shape = 'u8[4096]{0}', space=vmem, size = 0x1000, scoped, tag = 'output window, operand 0']
    #allocation3 [shape = 's32[2]{0}', space=sflag, size = 0x8, scoped, tag = 'scoped memory for spatial_nl.3']
    %9 = vsyncpa [#allocation3], 0
    %s10 = scalar_lea.sflag [#allocation3], 1
    %11 = vsyncpa %s10, 0
    loop: start=0, step=1, limit=4
    $region2: #{spatial_nl.3} parent=1 // loop_pre_header
      _
    $region3: #{spatial_nl.3} parent=1 // loop_header
      %s13 = sphi 0, %s17
      %p14 = scmp.ge.s32.totalorder %s13, 4
      %s20 = sphi 0, %s32
      %s21 = sphi 0, %s28
      %s22 = sphi 0, %s20
      %s23 = sphi 0, %s21
      %s24 = sphi 0, %s22
      %s25 = sphi 0, %s23
      %s37 = sphi 0, %s39
      %s40 = sphi 0, %s37
      %s41 = sphi 0, %s40
      %s57 = sphi 0, %s41
      %s65 = sphi 0, %s67
      %s68 = sphi 0, %s65
      %s69 = sphi 0, %s68
      %s85 = sphi 0, %s69
      %s89 = sphi 0, %s89
      %s91 = sphi 0, %s89
      %s92 = sphi 0, %s91
      %s106 = sphi 0, %s92
      %s110 = sphi 0, %s110
      %s112 = sphi 0, %s110
      %s113 = sphi 0, %s112
      %s127 = sphi 0, %s113
      %s135 = sphi 0, %s137
      %s138 = sphi 0, %s135
      %s139 = sphi 0, %s138
      %s155 = sphi 0, %s139
    $region4: #{spatial_nl.3} parent=1 // loop_header_branch
      %16 = sbr.rel (%p14) target = $region8
    $region5: #{spatial_nl.3} parent=1 // loop_body
      %s18 = ssub.s32 %s13, 1
      %s19 = ssub.s32 %s13, 2
      %s26 = sadd.s32 1, %s21
      %p27 = scmp.ge.s32.totalorder %s26, 1
      %s28 = scalar_select %p27, 0, %s26
      %s29 = sadd.s32 1, %s20
      %s30 = scalar_select %p27, %s29, %s20
      %p31 = scmp.ge.s32.totalorder %s30, 2
      %s32 = scalar_select %p31, 0, %s30
      %s33 = ssub.s32 %s20, %s32
      %s34 = ssub.s32 %s21, %s28
      %s35 = sor.u32 %s33, %s34
      %p36 = scmp.eq.s32.totalorder %s35, 0
      %s38 = sadd.s32 %s37, 1
      %s39 = scalar_select %p36, %s37, %s38
      %p42 = pneg %p36
      %p43 = scmp.eq.s32.totalorder %s13, 1
      %p44 = por %p42, %p43
      %p45 = scmp.ne.s32.totalorder %s37, %s40
      %p46 = scmp.eq.s32.totalorder %s13, 0
      %p47 = por %p45, %p46
      %p48 = scmp.ne.s32.totalorder %s37, %s40
      %p49 = scmp.eq.s32.totalorder %s18, 1
      %p50 = por %p48, %p49
      %p51 = scmp.ne.s32.totalorder %s40, %s41
      %p52 = scmp.eq.s32.totalorder %s18, 0
      %p53 = por %p51, %p52
      %p54 = scmp.ne.s32.totalorder %s40, %s41
      %p55 = scmp.eq.s32.totalorder %s19, 1
      %p56 = por %p54, %p55
      %p58 = scmp.ne.s32.totalorder %s41, %s57
      %p59 = scmp.eq.s32.totalorder %s19, 0
      %p60 = por %p58, %p59
      %s61 = ssub.s32 %s20, %s32
      %s62 = ssub.s32 %s21, %s28
      %s63 = sor.u32 %s61, %s62
      %p64 = scmp.eq.s32.totalorder %s63, 0
      %s66 = sadd.s32 %s65, 1
      %s67 = scalar_select %p64, %s65, %s66
      %p70 = pneg %p64
      %p71 = scmp.eq.s32.totalorder %s13, 1
      %p72 = por %p70, %p71
      %p73 = scmp.ne.s32.totalorder %s65, %s68
      %p74 = scmp.eq.s32.totalorder %s13, 0
      %p75 = por %p73, %p74
      %p76 = scmp.ne.s32.totalorder %s65, %s68
      %p77 = scmp.eq.s32.totalorder %s18, 1
      %p78 = por %p76, %p77
      %p79 = scmp.ne.s32.totalorder %s68, %s69
      %p80 = scmp.eq.s32.totalorder %s18, 0
      %p81 = por %p79, %p80
      %p82 = scmp.ne.s32.totalorder %s68, %s69
      %p83 = scmp.eq.s32.totalorder %s19, 1
      %p84 = por %p82, %p83
      %p86 = scmp.ne.s32.totalorder %s69, %s85
      %p87 = scmp.eq.s32.totalorder %s19, 0
      %p88 = por %p86, %p87
      %s90 = sadd.s32 %s89, 1
      %p93 = scmp.eq.s32.totalorder %s13, 1
      %p94 = scmp.ne.s32.totalorder %s89, %s91
      %p95 = scmp.eq.s32.totalorder %s13, 0
      %p96 = por %p94, %p95
      %p97 = scmp.ne.s32.totalorder %s89, %s91
      %p98 = scmp.eq.s32.totalorder %s18, 1
      %p99 = por %p97, %p98
      %p100 = scmp.ne.s32.totalorder %s91, %s92
      %p101 = scmp.eq.s32.totalorder %s18, 0
      %p102 = por %p100, %p101
      %p103 = scmp.ne.s32.totalorder %s91, %s92
      %p104 = scmp.eq.s32.totalorder %s19, 1
      %p105 = por %p103, %p104
      %p107 = scmp.ne.s32.totalorder %s92, %s106
      %p108 = scmp.eq.s32.totalorder %s19, 0
      %p109 = por %p107, %p108
      %s111 = sadd.s32 %s110, 1
      %p114 = scmp.eq.s32.totalorder %s13, 1
      %p115 = scmp.ne.s32.totalorder %s110, %s112
      %p116 = scmp.eq.s32.totalorder %s13, 0
      %p117 = por %p115, %p116
      %p118 = scmp.ne.s32.totalorder %s110, %s112
      %p119 = scmp.eq.s32.totalorder %s18, 1
      %p120 = por %p118, %p119
      %p121 = scmp.ne.s32.totalorder %s112, %s113
      %p122 = scmp.eq.s32.totalorder %s18, 0
      %p123 = por %p121, %p122
      %p124 = scmp.ne.s32.totalorder %s112, %s113
      %p125 = scmp.eq.s32.totalorder %s19, 1
      %p126 = por %p124, %p125
      %p128 = scmp.ne.s32.totalorder %s113, %s127
      %p129 = scmp.eq.s32.totalorder %s19, 0
      %p130 = por %p128, %p129
      %s131 = ssub.s32 %s20, %s32
      %s132 = ssub.s32 %s21, %s28
      %s133 = sor.u32 %s131, %s132
      %p134 = scmp.eq.s32.totalorder %s133, 0
      %s136 = sadd.s32 %s135, 1
      %s137 = scalar_select %p134, %s135, %s136
      %p140 = pneg %p134
      %p141 = scmp.eq.s32.totalorder %s13, 1
      %p142 = por %p140, %p141
      %p143 = scmp.ne.s32.totalorder %s135, %s138
      %p144 = scmp.eq.s32.totalorder %s13, 0
      %p145 = por %p143, %p144
      %p146 = scmp.ne.s32.totalorder %s135, %s138
      %p147 = scmp.eq.s32.totalorder %s18, 1
      %p148 = por %p146, %p147
      %p149 = scmp.ne.s32.totalorder %s138, %s139
      %p150 = scmp.eq.s32.totalorder %s18, 0
      %p151 = por %p149, %p150
      %p152 = scmp.ne.s32.totalorder %s138, %s139
      %p153 = scmp.eq.s32.totalorder %s19, 1
      %p154 = por %p152, %p153
      %p156 = scmp.ne.s32.totalorder %s139, %s155
      %p157 = scmp.eq.s32.totalorder %s19, 0
      %p158 = por %p156, %p157
      %p159 = scmp.le.s32.totalorder 1, %s13
      %p160 = scmp.lt.s32.totalorder %s13, 3
      %p161 = pnand %p159, %p160
      %p162 = pneg %p161
      // Predicated region
      $region9: #{spatial_nl.3} parent=5 // pred_check
        _
      $region10: #{spatial_nl.3} parent=5 // pred_check_branch
        %164 = sbr.rel (%p161) target = $region12
      $region11: #{spatial_nl.3} parent=5 // pred_region
        %s165 = ssub.s32 %s13, 1
        // Predicated region
        $region13: #{spatial_nl.3} parent=11 // pred_check
          %p166 = pneg %p102
        $region14: #{spatial_nl.3} parent=11 // pred_check_branch
          %168 = sbr.rel (%p166) target = $region16
        $region15: #{spatial_nl.3} parent=11 // pred_region
          _
        $region16: #{spatial_nl.3} parent=11 // pred_fallthru
          _
        // Predicated region
        $region17: #{spatial_nl.3} parent=11 // pred_check
          %p169 = pneg %p123
        $region18: #{spatial_nl.3} parent=11 // pred_check_branch
          %171 = sbr.rel (%p169) target = $region20
        $region19: #{spatial_nl.3} parent=11 // pred_region
          _
        $region20: #{spatial_nl.3} parent=11 // pred_fallthru
          _
      $region12: #{spatial_nl.3} parent=5 // pred_fallthru
        _
      %p172 = scmp.lt.s32.totalorder %s13, 2
      // Predicated region
      $region21: #{spatial_nl.3} parent=5 // pred_check
        %p173 = pneg %p172
      $region22: #{spatial_nl.3} parent=5 // pred_check_branch
        %175 = sbr.rel (%p173) target = $region24
      $region23: #{spatial_nl.3} parent=5 // pred_region
        // Predicated region
        $region25: #{spatial_nl.3} parent=23 // pred_check
          %p176 = pneg %p47
        $region26: #{spatial_nl.3} parent=23 // pred_check_branch
          %178 = sbr.rel (%p176) target = $region28
        $region27: #{spatial_nl.3} parent=23 // pred_region
          %p179 = scmp.lt.s32.totalorder %s20, 1
          %s180 = scalar_select %p179, %s20, 1
          %p181 = scmp.lt.s32.totalorder %s21, 0
          %s182 = scalar_select %p181, %s21, 0
          %s183 = sadd.s32 %s182, %s180
          %s184 = smul.addr %s183, 2
          %s185 = scalar_lea.vmem %s0, %s184
        $region28: #{spatial_nl.3} parent=23 // pred_fallthru
          _
        // Predicated region
        $region29: #{spatial_nl.3} parent=23 // pred_check
          %p186 = pneg %p75
        $region30: #{spatial_nl.3} parent=23 // pred_check_branch
          %188 = sbr.rel (%p186) target = $region32
        $region31: #{spatial_nl.3} parent=23 // pred_region
          %p189 = scmp.lt.s32.totalorder %s20, 1
          %s190 = scalar_select %p189, %s20, 1
          %p191 = scmp.lt.s32.totalorder %s21, 0
          %s192 = scalar_select %p191, %s21, 0
          %s193 = sadd.s32 %s192, %s190
          %s194 = smul.addr %s193, 4
          %s195 = scalar_lea.vmem %s1, %s194
        $region32: #{spatial_nl.3} parent=23 // pred_fallthru
          _
      $region24: #{spatial_nl.3} parent=5 // pred_fallthru
        _
      %p196 = scmp.le.s32.totalorder 1, %s13
      %p197 = scmp.lt.s32.totalorder %s13, 3
      %p198 = pnand %p196, %p197
      %p199 = pneg %p198
      // Predicated region
      $region33: #{spatial_nl.3} parent=5 // pred_check
        _
      $region34: #{spatial_nl.3} parent=5 // pred_check_branch
        %201 = sbr.rel (%p198) target = $region36
      $region35: #{spatial_nl.3} parent=5 // pred_region
        %s202 = ssub.s32 %s13, 1
        %p203 = scmp.lt.s32.totalorder %s22, 1
        %s204 = scalar_select %p203, %s22, 1
        %p205 = scmp.lt.s32.totalorder %s23, 0
        %s206 = scalar_select %p205, %s23, 0
        %s207 = sadd.s32 %s206, %s204
        %s208 = smul.addr %s207, 2
        %s209 = scalar_lea.vmem %s0, %s208
        %p210 = pneg %p53
        %p211 = pneg %p50
        %p212 = scmp.lt.s32.totalorder %s22, 1
        %s213 = scalar_select %p212, %s22, 1
        %p214 = scmp.lt.s32.totalorder %s23, 0
        %s215 = scalar_select %p214, %s23, 0
        %s216 = sadd.s32 %s215, %s213
        %s217 = smul.addr %s216, 4
        %s218 = scalar_lea.vmem %s1, %s217
        %p219 = pneg %p81
        %p220 = pneg %p78
        %p221 = pneg %p102
        %p222 = pneg %p99
        %p223 = pneg %p123
        %p224 = pneg %p120
        %p225 = pneg %p151
        %p226 = pneg %p148
        %s227 = sand.u32 %s138, 1
        %s228 = scalar_lea.sflag [#allocation3], %s227
        %s229 = sand.u32 %s138, 1
        %s230 = smul.addr %s229, 4
        %s231 = scalar_lea.vmem [#allocation2], %s230
        %p232 = scmp.lt.s32.totalorder %s22, 1
        %s233 = scalar_select %p232, %s22, 1
        %p234 = scmp.lt.s32.totalorder %s23, 0
        %s235 = scalar_select %p234, %s23, 0
        %s236 = sadd.s32 %s235, %s233
        %s237 = smul.addr %s236, 2
        %s238 = scalar_lea.vmem %s0, %s237
        %p239 = scmp.lt.s32.totalorder %s22, 1
        %s240 = scalar_select %p239, %s22, 1
        %p241 = scmp.lt.s32.totalorder %s23, 0
        %s242 = scalar_select %p241, %s23, 0
        %s243 = sadd.s32 %s242, %s240
        %s244 = smul.addr %s243, 4
        %s245 = scalar_lea.vmem %s1, %s244
        %v246 = vld [vmem:[%s2] sm:$0xf]
        %v247 = vld [vmem:[%s3] sm:$0xf]
        %v248 = vld [vmem:[%s238] sm:$0x3]
        %v249 = vunpack.c.l.bf16 %v248
        %v250 = vld [vmem:[%s245] sm:$0xf]
        %252 = vset.pattern.permute.xlu0 0
        %253 = vperm.xlu0 %252, %v246
        %v254 = vpop.permute.xlu0 %253
        %v256 = vmul.f32 %v249, %v254
        %258 = vset.pattern.permute.xlu0 0
        %259 = vperm.xlu0 %258, %v247
        %v260 = vpop.permute.xlu0 %259
        %v262 = vadd.f32 %v256, %v260
        %v263 = vadd.f32 %v262, %v250
        %vm264 = vcmask 125952
        %265 = vst.msk [vmem:[%s231] sm:$0xf] %vm264, %v263
        %s266 = sand.u32 %s138, 1
        %s267 = scalar_lea.sflag [#allocation3], %s266
        %s268 = sand.u32 %s138, 1
        %s269 = smul.addr %s268, 4
        %s270 = scalar_lea.vmem [#allocation2], %s269
        // Predicated region
        $region37: #{spatial_nl.3} parent=35 // pred_check
          %p271 = pneg %p148
        $region38: #{spatial_nl.3} parent=35 // pred_check_branch
          %273 = sbr.rel (%p271) target = $region40
        $region39: #{spatial_nl.3} parent=35 // pred_region
          %s275 = ssub.s32 64, 64
          %276 = vsyncadd %s267, %s275
          %s277 = sadd.s32 %s23, %s22
          %s278 = smul.addr %s277, 64
          %s279 = scalar_lea.hbm %s4, %s278
          %s281 = sshll.u32 %s270, 4
          %s282 = int_to_ptr.vmem [resolvable:$true] %s281
          %284 = dma.vmem_to_hbm [thread:$0]  %s282, 64, %s279, %s267
        $region40: #{spatial_nl.3} parent=35 // pred_fallthru
          _
      $region36: #{spatial_nl.3} parent=5 // pred_fallthru
        _
      %p285 = scmp.le.s32.totalorder 2, %s13
      // Predicated region
      $region41: #{spatial_nl.3} parent=5 // pred_check
        %p286 = pneg %p285
      $region42: #{spatial_nl.3} parent=5 // pred_check_branch
        %288 = sbr.rel (%p286) target = $region44
      $region43: #{spatial_nl.3} parent=5 // pred_region
        %s289 = ssub.s32 %s13, 2
        // Predicated region
        $region45: #{spatial_nl.3} parent=43 // pred_check
          %p290 = pneg %p154
        $region46: #{spatial_nl.3} parent=43 // pred_check_branch
          %292 = sbr.rel (%p290) target = $region48
        $region47: #{spatial_nl.3} parent=43 // pred_region
          %s293 = sand.u32 %s139, 1
          %s294 = scalar_lea.sflag [#allocation3], %s293
          %s295 = sand.u32 %s139, 1
          %s296 = smul.addr %s295, 4
          %s297 = scalar_lea.vmem [#allocation2], %s296
          %298 = dma.done %s294, 64
        $region48: #{spatial_nl.3} parent=43 // pred_fallthru
          _
      $region44: #{spatial_nl.3} parent=5 // pred_fallthru
        _
    $region6: #{spatial_nl.3} parent=1 // loop_footer
      %s17 = sadd.s32 1, %s13
    $region7: #{spatial_nl.3} parent=1 // loop_footer_branch
      %12 = sbr.rel target = $region3
    $region8: #{spatial_nl.3} parent=1 // loop_exit
      _
    %299 = vsyncpa [#allocation3], 1
    %s300 = scalar_lea.sflag [#allocation3], 1
    %301 = vsyncpa %s300, 1

// kernel: spatial_nl.2
$region0: #{spatial_nl.2}
  #allocation0 [shape = 'u32[]', space=smem, size = 0x4, offset = 0x4, fixed_abs, tag = 'smem constant byte address 0x4 - core index']
  #allocation1 [shape = 'u32[144,128]{1,0:T(1,128)}', space=vmem, size = 0x12000, scoped, tag = 'internal scratch']
  #allocation2 [shape = 'f32[2,16]{1,0:T(2,128)}', space=vmem, size = 0x400, scoped, tag = 'scratch operand']
  %s0 = inlined_call_operand.vmem [shape: bf16[2,2,16], index: 0, kind: input, shape index: {}]
  %s1 = inlined_call_operand.vmem [shape: f32[2,4,16], index: 1, kind: input, shape index: {}]
  %s2 = inlined_call_operand.vmem [shape: bf16[4,4], index: 2, kind: input, shape index: {}]
  %s3 = inlined_call_operand.vmem [shape: bf16[4,2], index: 3, kind: input, shape index: {}]
  %s4 = inlined_call_operand.vmem [shape: bf16[2,4,16], index: 4, kind: output, shape index: {0}]
  %s5 = inlined_call_operand.vmem [shape: f32[2,4,1], index: 5, kind: output, shape index: {1}]
  %s6 = inlined_call_operand.vmem [shape: f32[2,4,1], index: 6, kind: output, shape index: {2}]
  %7 = xla_tuple %s4, %s5, %s6
  %s8 = sld [smem:[#allocation0]]
  $region73: #{spatial_nl.2} parent=0
    _
  %s10 = ssub.s32 1, %s8
  %s11 = scalar_select 0, %s10, %s8
  loop: start=0, step=1, limit=4
  $region2: #{spatial_nl.2} parent=0 // loop_pre_header
    _
  $region3: #{spatial_nl.2} parent=0 // loop_header
    %s13 = sphi 0, %s17
    %p14 = scmp.ge.s32.totalorder %s13, 4
    %s20 = sphi 0, %s32
    %s21 = sphi 0, %s28
    %s22 = sphi 0, %s20
    %s23 = sphi 0, %s21
    %s24 = sphi 0, %s22
    %s25 = sphi 0, %s23
    %s35 = sphi 0, %s37
    %s38 = sphi 0, %s35
    %s39 = sphi 0, %s38
    %s55 = sphi 0, %s39
    %s63 = sphi 0, %s65
    %s66 = sphi 0, %s63
    %s67 = sphi 0, %s66
    %s83 = sphi 0, %s67
    %s87 = sphi 0, %s87
    %s89 = sphi 0, %s87
    %s90 = sphi 0, %s89
    %s104 = sphi 0, %s90
    %s108 = sphi 0, %s108
    %s110 = sphi 0, %s108
    %s111 = sphi 0, %s110
    %s125 = sphi 0, %s111
    %s131 = sphi 0, %s133
    %s134 = sphi 0, %s131
    %s135 = sphi 0, %s134
    %s151 = sphi 0, %s135
    %s157 = sphi 0, %s159
    %s160 = sphi 0, %s157
    %s161 = sphi 0, %s160
    %s177 = sphi 0, %s161
    %s183 = sphi 0, %s185
    %s186 = sphi 0, %s183
    %s187 = sphi 0, %s186
    %s203 = sphi 0, %s187
  $region4: #{spatial_nl.2} parent=0 // loop_header_branch
    %16 = sbr.rel (%p14) target = $region8
  $region5: #{spatial_nl.2} parent=0 // loop_body
    %s18 = ssub.s32 %s13, 1
    %s19 = ssub.s32 %s13, 2
    %s26 = sadd.s32 1, %s21
    %p27 = scmp.ge.s32.totalorder %s26, 1
    %s28 = scalar_select %p27, 0, %s26
    %s29 = sadd.s32 1, %s20
    %s30 = scalar_select %p27, %s29, %s20
    %p31 = scmp.ge.s32.totalorder %s30, 2
    %s32 = scalar_select %p31, 0, %s30
    %s33 = ssub.s32 %s20, %s32
    %p34 = scmp.eq.s32.totalorder %s33, 0
    %s36 = sadd.s32 %s35, 1
    %s37 = scalar_select %p34, %s35, %s36
    %p40 = pneg %p34
    %p41 = scmp.eq.s32.totalorder %s13, 1
    %p42 = por %p40, %p41
    %p43 = scmp.ne.s32.totalorder %s35, %s38
    %p44 = scmp.eq.s32.totalorder %s13, 0
    %p45 = por %p43, %p44
    %p46 = scmp.ne.s32.totalorder %s35, %s38
    %p47 = scmp.eq.s32.totalorder %s18, 1
    %p48 = por %p46, %p47
    %p49 = scmp.ne.s32.totalorder %s38, %s39
    %p50 = scmp.eq.s32.totalorder %s18, 0
    %p51 = por %p49, %p50
    %p52 = scmp.ne.s32.totalorder %s38, %s39
    %p53 = scmp.eq.s32.totalorder %s19, 1
    %p54 = por %p52, %p53
    %p56 = scmp.ne.s32.totalorder %s39, %s55
    %p57 = scmp.eq.s32.totalorder %s19, 0
    %p58 = por %p56, %p57
    %s59 = ssub.s32 %s20, %s32
    %s60 = ssub.s32 %s21, %s28
    %s61 = sor.u32 %s59, %s60
    %p62 = scmp.eq.s32.totalorder %s61, 0
    %s64 = sadd.s32 %s63, 1
    %s65 = scalar_select %p62, %s63, %s64
    %p68 = pneg %p62
    %p69 = scmp.eq.s32.totalorder %s13, 1
    %p70 = por %p68, %p69
    %p71 = scmp.ne.s32.totalorder %s63, %s66
    %p72 = scmp.eq.s32.totalorder %s13, 0
    %p73 = por %p71, %p72
    %p74 = scmp.ne.s32.totalorder %s63, %s66
    %p75 = scmp.eq.s32.totalorder %s18, 1
    %p76 = por %p74, %p75
    %p77 = scmp.ne.s32.totalorder %s66, %s67
    %p78 = scmp.eq.s32.totalorder %s18, 0
    %p79 = por %p77, %p78
    %p80 = scmp.ne.s32.totalorder %s66, %s67
    %p81 = scmp.eq.s32.totalorder %s19, 1
    %p82 = por %p80, %p81
    %p84 = scmp.ne.s32.totalorder %s67, %s83
    %p85 = scmp.eq.s32.totalorder %s19, 0
    %p86 = por %p84, %p85
    %s88 = sadd.s32 %s87, 1
    %p91 = scmp.eq.s32.totalorder %s13, 1
    %p92 = scmp.ne.s32.totalorder %s87, %s89
    %p93 = scmp.eq.s32.totalorder %s13, 0
    %p94 = por %p92, %p93
    %p95 = scmp.ne.s32.totalorder %s87, %s89
    %p96 = scmp.eq.s32.totalorder %s18, 1
    %p97 = por %p95, %p96
    %p98 = scmp.ne.s32.totalorder %s89, %s90
    %p99 = scmp.eq.s32.totalorder %s18, 0
    %p100 = por %p98, %p99
    %p101 = scmp.ne.s32.totalorder %s89, %s90
    %p102 = scmp.eq.s32.totalorder %s19, 1
    %p103 = por %p101, %p102
    %p105 = scmp.ne.s32.totalorder %s90, %s104
    %p106 = scmp.eq.s32.totalorder %s19, 0
    %p107 = por %p105, %p106
    %s109 = sadd.s32 %s108, 1
    %p112 = scmp.eq.s32.totalorder %s13, 1
    %p113 = scmp.ne.s32.totalorder %s108, %s110
    %p114 = scmp.eq.s32.totalorder %s13, 0
    %p115 = por %p113, %p114
    %p116 = scmp.ne.s32.totalorder %s108, %s110
    %p117 = scmp.eq.s32.totalorder %s18, 1
    %p118 = por %p116, %p117
    %p119 = scmp.ne.s32.totalorder %s110, %s111
    %p120 = scmp.eq.s32.totalorder %s18, 0
    %p121 = por %p119, %p120
    %p122 = scmp.ne.s32.totalorder %s110, %s111
    %p123 = scmp.eq.s32.totalorder %s19, 1
    %p124 = por %p122, %p123
    %p126 = scmp.ne.s32.totalorder %s111, %s125
    %p127 = scmp.eq.s32.totalorder %s19, 0
    %p128 = por %p126, %p127
    %s129 = ssub.s32 %s20, %s32
    %p130 = scmp.eq.s32.totalorder %s129, 0
    %s132 = sadd.s32 %s131, 1
    %s133 = scalar_select %p130, %s131, %s132
    %p136 = pneg %p130
    %p137 = scmp.eq.s32.totalorder %s13, 1
    %p138 = por %p136, %p137
    %p139 = scmp.ne.s32.totalorder %s131, %s134
    %p140 = scmp.eq.s32.totalorder %s13, 0
    %p141 = por %p139, %p140
    %p142 = scmp.ne.s32.totalorder %s131, %s134
    %p143 = scmp.eq.s32.totalorder %s18, 1
    %p144 = por %p142, %p143
    %p145 = scmp.ne.s32.totalorder %s134, %s135
    %p146 = scmp.eq.s32.totalorder %s18, 0
    %p147 = por %p145, %p146
    %p148 = scmp.ne.s32.totalorder %s134, %s135
    %p149 = scmp.eq.s32.totalorder %s19, 1
    %p150 = por %p148, %p149
    %p152 = scmp.ne.s32.totalorder %s135, %s151
    %p153 = scmp.eq.s32.totalorder %s19, 0
    %p154 = por %p152, %p153
    %s155 = ssub.s32 %s20, %s32
    %p156 = scmp.eq.s32.totalorder %s155, 0
    %s158 = sadd.s32 %s157, 1
    %s159 = scalar_select %p156, %s157, %s158
    %p162 = pneg %p156
    %p163 = scmp.eq.s32.totalorder %s13, 1
    %p164 = por %p162, %p163
    %p165 = scmp.ne.s32.totalorder %s157, %s160
    %p166 = scmp.eq.s32.totalorder %s13, 0
    %p167 = por %p165, %p166
    %p168 = scmp.ne.s32.totalorder %s157, %s160
    %p169 = scmp.eq.s32.totalorder %s18, 1
    %p170 = por %p168, %p169
    %p171 = scmp.ne.s32.totalorder %s160, %s161
    %p172 = scmp.eq.s32.totalorder %s18, 0
    %p173 = por %p171, %p172
    %p174 = scmp.ne.s32.totalorder %s160, %s161
    %p175 = scmp.eq.s32.totalorder %s19, 1
    %p176 = por %p174, %p175
    %p178 = scmp.ne.s32.totalorder %s161, %s177
    %p179 = scmp.eq.s32.totalorder %s19, 0
    %p180 = por %p178, %p179
    %s181 = ssub.s32 %s20, %s32
    %p182 = scmp.eq.s32.totalorder %s181, 0
    %s184 = sadd.s32 %s183, 1
    %s185 = scalar_select %p182, %s183, %s184
    %p188 = pneg %p182
    %p189 = scmp.eq.s32.totalorder %s13, 1
    %p190 = por %p188, %p189
    %p191 = scmp.ne.s32.totalorder %s183, %s186
    %p192 = scmp.eq.s32.totalorder %s13, 0
    %p193 = por %p191, %p192
    %p194 = scmp.ne.s32.totalorder %s183, %s186
    %p195 = scmp.eq.s32.totalorder %s18, 1
    %p196 = por %p194, %p195
    %p197 = scmp.ne.s32.totalorder %s186, %s187
    %p198 = scmp.eq.s32.totalorder %s18, 0
    %p199 = por %p197, %p198
    %p200 = scmp.ne.s32.totalorder %s186, %s187
    %p201 = scmp.eq.s32.totalorder %s19, 1
    %p202 = por %p200, %p201
    %p204 = scmp.ne.s32.totalorder %s187, %s203
    %p205 = scmp.eq.s32.totalorder %s19, 0
    %p206 = por %p204, %p205
    %p207 = scmp.le.s32.totalorder 1, %s13
    %p208 = scmp.lt.s32.totalorder %s13, 3
    %p209 = pnand %p207, %p208
    %p210 = pneg %p209
    // Predicated region
    $region9: #{spatial_nl.2} parent=5 // pred_check
      _
    $region10: #{spatial_nl.2} parent=5 // pred_check_branch
      %212 = sbr.rel (%p209) target = $region12
    $region11: #{spatial_nl.2} parent=5 // pred_region
      %s213 = ssub.s32 %s13, 1
      // Predicated region
      $region13: #{spatial_nl.2} parent=11 // pred_check
        %p214 = pneg %p100
      $region14: #{spatial_nl.2} parent=11 // pred_check_branch
        %216 = sbr.rel (%p214) target = $region16
      $region15: #{spatial_nl.2} parent=11 // pred_region
        _
      $region16: #{spatial_nl.2} parent=11 // pred_fallthru
        _
      // Predicated region
      $region17: #{spatial_nl.2} parent=11 // pred_check
        %p217 = pneg %p121
      $region18: #{spatial_nl.2} parent=11 // pred_check_branch
        %219 = sbr.rel (%p217) target = $region20
      $region19: #{spatial_nl.2} parent=11 // pred_region
        _
      $region20: #{spatial_nl.2} parent=11 // pred_fallthru
        _
    $region12: #{spatial_nl.2} parent=5 // pred_fallthru
      _
    %p220 = scmp.lt.s32.totalorder %s13, 2
    // Predicated region
    $region21: #{spatial_nl.2} parent=5 // pred_check
      %p221 = pneg %p220
    $region22: #{spatial_nl.2} parent=5 // pred_check_branch
      %223 = sbr.rel (%p221) target = $region24
    $region23: #{spatial_nl.2} parent=5 // pred_region
      // Predicated region
      $region25: #{spatial_nl.2} parent=23 // pred_check
        %p224 = pneg %p45
      $region26: #{spatial_nl.2} parent=23 // pred_check_branch
        %226 = sbr.rel (%p224) target = $region28
      $region27: #{spatial_nl.2} parent=23 // pred_region
        %p227 = scmp.lt.s32.totalorder %s20, 1
        %s228 = scalar_select %p227, %s20, 1
        %s229 = scalar_lea.vmem %s0, %s228
      $region28: #{spatial_nl.2} parent=23 // pred_fallthru
        _
      // Predicated region
      $region29: #{spatial_nl.2} parent=23 // pred_check
        %p230 = pneg %p73
      $region30: #{spatial_nl.2} parent=23 // pred_check_branch
        %232 = sbr.rel (%p230) target = $region32
      $region31: #{spatial_nl.2} parent=23 // pred_region
        %p233 = scmp.lt.s32.totalorder %s20, 1
        %s234 = scalar_select %p233, %s20, 1
        %p235 = scmp.lt.s32.totalorder %s21, 0
        %s236 = scalar_select %p235, %s21, 0
        %s237 = sadd.s32 %s236, %s234
        %s238 = smul.addr %s237, 4
        %s239 = scalar_lea.vmem %s1, %s238
      $region32: #{spatial_nl.2} parent=23 // pred_fallthru
        _
    $region24: #{spatial_nl.2} parent=5 // pred_fallthru
      _
    %p240 = scmp.le.s32.totalorder 1, %s13
    %p241 = scmp.lt.s32.totalorder %s13, 3
    %p242 = pnand %p240, %p241
    %p243 = pneg %p242
    // Predicated region
    $region33: #{spatial_nl.2} parent=5 // pred_check
      _
    $region34: #{spatial_nl.2} parent=5 // pred_check_branch
      %245 = sbr.rel (%p242) target = $region36
    $region35: #{spatial_nl.2} parent=5 // pred_region
      %s246 = ssub.s32 %s13, 1
      %p247 = scmp.lt.s32.totalorder %s22, 1
      %s248 = scalar_select %p247, %s22, 1
      %s249 = scalar_lea.vmem %s0, %s248
      %p250 = pneg %p51
      %p251 = pneg %p48
      %p252 = scmp.lt.s32.totalorder %s22, 1
      %s253 = scalar_select %p252, %s22, 1
      %p254 = scmp.lt.s32.totalorder %s23, 0
      %s255 = scalar_select %p254, %s23, 0
      %s256 = sadd.s32 %s255, %s253
      %s257 = smul.addr %s256, 4
      %s258 = scalar_lea.vmem %s1, %s257
      %p259 = pneg %p79
      %p260 = pneg %p76
      %p261 = pneg %p100
      %p262 = pneg %p97
      %p263 = pneg %p121
      %p264 = pneg %p118
      %p265 = pneg %p147
      %p266 = pneg %p144
      %p267 = scmp.lt.s32.totalorder %s22, 1
      %s268 = scalar_select %p267, %s22, 1
      %s269 = smul.addr %s268, 2
      %s270 = scalar_lea.vmem %s4, %s269
      %p271 = pneg %p173
      %p272 = pneg %p170
      %p273 = scmp.lt.s32.totalorder %s22, 1
      %s274 = scalar_select %p273, %s22, 1
      %s275 = smul.addr %s274, 4
      %s276 = scalar_lea.vmem %s5, %s275
      %p277 = pneg %p199
      %p278 = pneg %p196
      %p279 = scmp.lt.s32.totalorder %s22, 1
      %s280 = scalar_select %p279, %s22, 1
      %s281 = smul.addr %s280, 4
      %s282 = scalar_lea.vmem %s6, %s281
      %p283 = scmp.lt.s32.totalorder %s22, 1
      %s284 = scalar_select %p283, %s22, 1
      %s285 = scalar_lea.vmem %s0, %s284
      %p286 = scmp.lt.s32.totalorder %s22, 1
      %s287 = scalar_select %p286, %s22, 1
      %p288 = scmp.lt.s32.totalorder %s23, 0
      %s289 = scalar_select %p288, %s23, 0
      %s290 = sadd.s32 %s289, %s287
      %s291 = smul.addr %s290, 4
      %s292 = scalar_lea.vmem %s1, %s291
      %p293 = scmp.lt.s32.totalorder %s22, 1
      %s294 = scalar_select %p293, %s22, 1
      %s295 = smul.addr %s294, 2
      %s296 = scalar_lea.vmem %s4, %s295
      %p297 = scmp.lt.s32.totalorder %s22, 1
      %s298 = scalar_select %p297, %s22, 1
      %s299 = smul.addr %s298, 4
      %s300 = scalar_lea.vmem %s5, %s299
      %p301 = scmp.lt.s32.totalorder %s22, 1
      %s302 = scalar_select %p301, %s22, 1
      %s303 = smul.addr %s302, 4
      %s304 = scalar_lea.vmem %s6, %s303
      %p306 = scmp.eq.s32.totalorder %s23, 0
      // Predicated region
      $region37: #{spatial_nl.2} parent=35 // pred_check
        %p307 = pneg %p306
      $region38: #{spatial_nl.2} parent=35 // pred_check_branch
        %309 = sbr.rel (%p307) target = $region40
      $region39: #{spatial_nl.2} parent=35 // pred_region
        %vm310 = vcmask 123904
        %311 = vst.msk [vmem:[#allocation2] sm:$0x3] %vm310, 0.0
      $region40: #{spatial_nl.2} parent=35 // pred_fallthru
        _
      %v312 = vld [vmem:[%s292] sm:$0xf]
      %v313 = vpack.c.bf16 %v312, %v312
      %v314 = vld [vmem:[%s2] sm:$0x3]
      %vm315 = vcmask 31744
      %v317 = vsel %vm315, %v314, 0
      %vm319 = vcmask 1041408
      %v321 = vsel %vm319, %v313, 0
      %323 = vmatprep.subr.bf16.mxu0 0
      %324 = vmatpush1.bf16.msra.mxu0 %v321
      %325 = vmatprep.subr.bf16.mxu0 0
      %326 = vmatpush1.bf16.msra.mxu0 0
      %327 = vmatprep.subr.bf16.mxu0 0
      %328 = vmatpush1.bf16.msra.mxu0 0
      %329 = vmatprep.subr.bf16.mxu0 0
      %330 = vmatpush1.bf16.msra.mxu0 0
      %331 = vmatprep.subr.bf16.mxu0 0
      %332 = vmatpush1.bf16.msra.mxu0 0
      %333 = vmatprep.subr.bf16.mxu0 0
      %334 = vmatpush1.bf16.msra.mxu0 0
      %335 = vmatprep.subr.bf16.mxu0 0
      %336 = vmatpush1.bf16.msra.mxu0 0
      %337 = vmatprep.subr.bf16.mxu0 0
      %338 = vmatpush1.bf16.msra.mxu0 0
      %339 = vmatprep.subr.bf16.mxu0 0
      %340 = vmatpush1.bf16.msra.mxu0 0
      %341 = vmatprep.subr.bf16.mxu0 0
      %342 = vmatpush1.bf16.msra.mxu0 0
      %343 = vmatprep.subr.bf16.mxu0 0
      %344 = vmatpush1.bf16.msra.mxu0 0
      %345 = vmatprep.subr.bf16.mxu0 0
      %346 = vmatpush1.bf16.msra.mxu0 0
      %347 = vmatprep.subr.bf16.mxu0 0
      %348 = vmatpush1.bf16.msra.mxu0 0
      %349 = vmatprep.subr.bf16.mxu0 0
      %350 = vmatpush1.bf16.msra.mxu0 0
      %351 = vmatprep.subr.bf16.mxu0 0
      %352 = vmatpush1.bf16.msra.mxu0 0
      %353 = vmatprep.subr.bf16.mxu0 0
      %354 = vmatpush1.bf16.msra.mxu0 0
      %355 = vmatprep.mubr.bf16.mxu0 0
      %356 = vmatmul.mubr.bf16.gmra.mrb[0].mxu0 %v317
      %v357 = vpop.f32.mrb[0].mxu0
      %v358 = vadd.f32 0.0, %v357
      %v359 = vpop.f32.mrb[0].mxu0
      %v360 = vpop.f32.mrb[0].mxu0
      %v361 = vpop.f32.mrb[0].mxu0
      %362 = vdwg.mxu0
      %v363 = vpack.c.bf16 %v358, %v358
      %v364 = vld [vmem:[%s285] sm:$0x1]
      %365 = vxpose.xlu0.c.b16.start [1/8] %v363, 128
      %366 = vxpose.xlu0.c.b16.cont [2/8] 0, 128
      %367 = vxpose.xlu0.c.b16.cont [3/8] 0, 128
      %368 = vxpose.xlu0.c.b16.cont [4/8] 0, 128
      %369 = vxpose.xlu0.c.b16.cont [5/8] 0, 128
      %370 = vxpose.xlu0.c.b16.cont [6/8] 0, 128
      %371 = vxpose.xlu0.c.b16.cont [7/8] 0, 128
      %372 = vxpose.xlu0.c.b16.end [8/8] 0, 128
      %v373 = vpop.trf.xlu0
      %v374 = vpop.trf.xlu0
      %v375 = vpop.trf.xlu0
      %v376 = vpop.trf.xlu0
      %v377 = vpop.trf.xlu0
      %v378 = vpop.trf.xlu0
      %v379 = vpop.trf.xlu0
      %v380 = vpop.trf.xlu0
      %vm381 = vcmask 15360
      %v383 = vsel %vm381, %v373, 0
      %vm385 = vcmask 1040384
      %v387 = vsel %vm385, %v364, 0
      %389 = vmatprep.subr.bf16.mxu0 0
      %390 = vmatpush1.bf16.msra.mxu0 %v387
      %391 = vmatprep.subr.bf16.mxu0 0
      %392 = vmatpush1.bf16.msra.mxu0 0
      %393 = vmatprep.subr.bf16.mxu0 0
      %394 = vmatpush1.bf16.msra.mxu0 0
      %395 = vmatprep.subr.bf16.mxu0 0
      %396 = vmatpush1.bf16.msra.mxu0 0
      %397 = vmatprep.subr.bf16.mxu0 0
      %398 = vmatpush1.bf16.msra.mxu0 0
      %399 = vmatprep.subr.bf16.mxu0 0
      %400 = vmatpush1.bf16.msra.mxu0 0
      %401 = vmatprep.subr.bf16.mxu0 0
      %402 = vmatpush1.bf16.msra.mxu0 0
      %403 = vmatprep.subr.bf16.mxu0 0
      %404 = vmatpush1.bf16.msra.mxu0 0
      %405 = vmatprep.subr.bf16.mxu0 0
      %406 = vmatpush1.bf16.msra.mxu0 0
      %407 = vmatprep.subr.bf16.mxu0 0
      %408 = vmatpush1.bf16.msra.mxu0 0
      %409 = vmatprep.subr.bf16.mxu0 0
      %410 = vmatpush1.bf16.msra.mxu0 0
      %411 = vmatprep.subr.bf16.mxu0 0
      %412 = vmatpush1.bf16.msra.mxu0 0
      %413 = vmatprep.subr.bf16.mxu0 0
      %414 = vmatpush1.bf16.msra.mxu0 0
      %415 = vmatprep.subr.bf16.mxu0 0
      %416 = vmatpush1.bf16.msra.mxu0 0
      %417 = vmatprep.subr.bf16.mxu0 0
      %418 = vmatpush1.bf16.msra.mxu0 0
      %419 = vmatprep.subr.bf16.mxu0 0
      %420 = vmatpush1.bf16.msra.mxu0 0
      %421 = vmatprep.mubr.bf16.mxu0 0
      %422 = vmatmul.mubr.bf16.gmra.mrb[0].mxu0 %v383
      %v423 = vpop.f32.mrb[0].mxu0
      %v424 = vadd.f32 0.0, %v423
      %v425 = vpop.f32.mrb[0].mxu0
      %v426 = vpop.f32.mrb[0].mxu0
      %v427 = vadd.f32 0.0, %v426
      %v428 = vpop.f32.mrb[0].mxu0
      %429 = vdwg.mxu0
      %vm430 = vcmask 130048
      %v431 = vsel %vm430, %v424, -inf
      %432 = vmax.xlane.f32.xlu0 %v431
      %v433 = vpop.xlane.xlu0 %432
      %v434 = vsel %vm430, %v427, -inf
      %435 = vmax.xlane.f32.xlu0 %v434
      %v436 = vpop.xlane.xlu0 %435
      %v437 = vsub.f32 %v424, %v433
      %v438 = vsub.f32 %v427, %v436
      %v439 = vmul.f32 %v437, 1.442695
      %v440 = vpow.pop %v439
      %v441 = vmul.f32 %v438, 1.442695
      %v442 = vpow.pop %v441
      %v443 = vsel %vm430, %v440, 0.0
      %444 = vadd.xlane.f32.xlu0 %v443
      %v445 = vpop.xlane.xlu0 %444
      %v446 = vsel %vm430, %v442, 0.0
      %447 = vadd.xlane.f32.xlu0 %v446
      %v448 = vpop.xlane.xlu0 %447
      %v449 = vrcp.pop %v445
      %v450 = vrcp.pop %v448
      %v451 = vmul.f32 %v440, %v449
      %v452 = vmul.f32 %v442, %v450
      %v453 = vpack.c.bf16 %v452, %v451
      %v454 = vld [vmem:[#allocation2] sm:$0x3]
      %v456 = vrot.slane %v363, 1
      %v458 = vsel %vm430, %v456, 0
      %460 = vmatprep.subr.bf16.mxu0 0
      %461 = vmatpush1.bf16.msra.mxu0 %v453
      %462 = vmatprep.subr.bf16.mxu0 0
      %463 = vmatpush1.bf16.msra.mxu0 0
      %464 = vmatprep.subr.bf16.mxu0 0
      %465 = vmatpush1.bf16.msra.mxu0 0
      %466 = vmatprep.subr.bf16.mxu0 0
      %467 = vmatpush1.bf16.msra.mxu0 0
      %468 = vmatprep.subr.bf16.mxu0 0
      %469 = vmatpush1.bf16.msra.mxu0 0
      %470 = vmatprep.subr.bf16.mxu0 0
      %471 = vmatpush1.bf16.msra.mxu0 0
      %472 = vmatprep.subr.bf16.mxu0 0
      %473 = vmatpush1.bf16.msra.mxu0 0
      %474 = vmatprep.subr.bf16.mxu0 0
      %475 = vmatpush1.bf16.msra.mxu0 0
      %476 = vmatprep.subr.bf16.mxu0 0
      %477 = vmatpush1.bf16.msra.mxu0 0
      %478 = vmatprep.subr.bf16.mxu0 0
      %479 = vmatpush1.bf16.msra.mxu0 0
      %480 = vmatprep.subr.bf16.mxu0 0
      %481 = vmatpush1.bf16.msra.mxu0 0
      %482 = vmatprep.subr.bf16.mxu0 0
      %483 = vmatpush1.bf16.msra.mxu0 0
      %484 = vmatprep.subr.bf16.mxu0 0
      %485 = vmatpush1.bf16.msra.mxu0 0
      %486 = vmatprep.subr.bf16.mxu0 0
      %487 = vmatpush1.bf16.msra.mxu0 0
      %488 = vmatprep.subr.bf16.mxu0 0
      %489 = vmatpush1.bf16.msra.mxu0 0
      %490 = vmatprep.subr.bf16.mxu0 0
      %491 = vmatpush1.bf16.msra.mxu0 0
      %492 = vmatprep.mubr.bf16.mxu0 0
      %493 = vmatmul.mubr.bf16.gmra.mrb[0].mxu0 %v458
      %v494 = vpop.f32.mrb[0].mxu0
      %v495 = vadd.f32 0.0, %v494
      %v496 = vpop.f32.mrb[0].mxu0
      %v497 = vpop.f32.mrb[0].mxu0
      %v498 = vpop.f32.mrb[0].mxu0
      %499 = vdwg.mxu0
      %v500 = vadd.f32 %v454, %v495
      %vm501 = vcmask 123904
      %502 = vst.msk [vmem:[#allocation2] sm:$0x3] %vm501, %v500
      // Predicated region
      $region41: #{spatial_nl.2} parent=35 // pred_check
        %p503 = pneg %p306
      $region42: #{spatial_nl.2} parent=35 // pred_check_branch
        %505 = sbr.rel (%p503) target = $region44
      $region43: #{spatial_nl.2} parent=35 // pred_region
        %v506 = vld [vmem:[#allocation2] sm:$0x3]
        %v507 = vpack.c.bf16 %v506, %v506
        %v508 = vld [vmem:[%s3] sm:$0x3]
        %v510 = vsel %vm381, %v508, 0
        %v513 = vsel %vm385, %v507, 0
        %515 = vmatprep.subr.bf16.mxu0 0
        %516 = vmatpush1.bf16.msra.mxu0 %v513
        %517 = vmatprep.subr.bf16.mxu0 0
        %518 = vmatpush1.bf16.msra.mxu0 0
        %519 = vmatprep.subr.bf16.mxu0 0
        %520 = vmatpush1.bf16.msra.mxu0 0
        %521 = vmatprep.subr.bf16.mxu0 0
        %522 = vmatpush1.bf16.msra.mxu0 0
        %523 = vmatprep.subr.bf16.mxu0 0
        %524 = vmatpush1.bf16.msra.mxu0 0
        %525 = vmatprep.subr.bf16.mxu0 0
        %526 = vmatpush1.bf16.msra.mxu0 0
        %527 = vmatprep.subr.bf16.mxu0 0
        %528 = vmatpush1.bf16.msra.mxu0 0
        %529 = vmatprep.subr.bf16.mxu0 0
        %530 = vmatpush1.bf16.msra.mxu0 0
        %531 = vmatprep.subr.bf16.mxu0 0
        %532 = vmatpush1.bf16.msra.mxu0 0
        %533 = vmatprep.subr.bf16.mxu0 0
        %534 = vmatpush1.bf16.msra.mxu0 0
        %535 = vmatprep.subr.bf16.mxu0 0
        %536 = vmatpush1.bf16.msra.mxu0 0
        %537 = vmatprep.subr.bf16.mxu0 0
        %538 = vmatpush1.bf16.msra.mxu0 0
        %539 = vmatprep.subr.bf16.mxu0 0
        %540 = vmatpush1.bf16.msra.mxu0 0
        %541 = vmatprep.subr.bf16.mxu0 0
        %542 = vmatpush1.bf16.msra.mxu0 0
        %543 = vmatprep.subr.bf16.mxu0 0
        %544 = vmatpush1.bf16.msra.mxu0 0
        %545 = vmatprep.subr.bf16.mxu0 0
        %546 = vmatpush1.bf16.msra.mxu0 0
        %547 = vmatprep.mubr.bf16.mxu0 0
        %548 = vmatmul.mubr.bf16.gmra.mrb[0].mxu0 %v510
        %v549 = vpop.f32.mrb[0].mxu0
        %v550 = vadd.f32 0.0, %v549
        %v551 = vpop.f32.mrb[0].mxu0
        %v552 = vpop.f32.mrb[0].mxu0
        %v553 = vpop.f32.mrb[0].mxu0
        %554 = vdwg.mxu0
        %v555 = vpack.c.bf16 %v550, %v550
        %556 = vst.msk [vmem:[%s296] sm:$0x3] %vm501, %v555
        %vm557 = vcmask 125952
        %v558 = vsel %vm557, %v550, 0.0
        %559 = vadd.xlane.f32.xlu0 %v558
        %v560 = vpop.xlane.xlu0 %559
        %v561 = vadd.f32 %v560, 0.0
        %v562 = vmul.f32 %v550, %v550
        %v563 = vsel %vm557, %v562, 0.0
        %564 = vadd.xlane.f32.xlu0 %v563
        %v565 = vpop.xlane.xlu0 %564
        %v566 = vadd.f32 %v565, 0.0
        %vm567 = vcmask 3072
        %568 = vst.msk [vmem:[%s300] sm:$0xf] %vm567, %v561
        %569 = vst.msk [vmem:[%s304] sm:$0xf] %vm567, %v566
      $region44: #{spatial_nl.2} parent=35 // pred_fallthru
        _
      %p570 = scmp.lt.s32.totalorder %s22, 1
      %s571 = scalar_select %p570, %s22, 1
      %s572 = smul.addr %s571, 2
      %s573 = scalar_lea.vmem %s4, %s572
      %p574 = scmp.lt.s32.totalorder %s22, 1
      %s575 = scalar_select %p574, %s22, 1
      %s576 = smul.addr %s575, 4
      %s577 = scalar_lea.vmem %s5, %s576
      %p578 = scmp.lt.s32.totalorder %s22, 1
      %s579 = scalar_select %p578, %s22, 1
      %s580 = smul.addr %s579, 4
      %s581 = scalar_lea.vmem %s6, %s580
      // Predicated region
      $region45: #{spatial_nl.2} parent=35 // pred_check
        %p582 = pneg %p144
      $region46: #{spatial_nl.2} parent=35 // pred_check_branch
        %584 = sbr.rel (%p582) target = $region48
      $region47: #{spatial_nl.2} parent=35 // pred_region
        _
      $region48: #{spatial_nl.2} parent=35 // pred_fallthru
        _
      // Predicated region
      $region49: #{spatial_nl.2} parent=35 // pred_check
        %p585 = pneg %p170
      $region50: #{spatial_nl.2} parent=35 // pred_check_branch
        %587 = sbr.rel (%p585) target = $region52
      $region51: #{spatial_nl.2} parent=35 // pred_region
        _
      $region52: #{spatial_nl.2} parent=35 // pred_fallthru
        _
      // Predicated region
      $region53: #{spatial_nl.2} parent=35 // pred_check
        %p588 = pneg %p196
      $region54: #{spatial_nl.2} parent=35 // pred_check_branch
        %590 = sbr.rel (%p588) target = $region56
      $region55: #{spatial_nl.2} parent=35 // pred_region
        _
      $region56: #{spatial_nl.2} parent=35 // pred_fallthru
        _
    $region36: #{spatial_nl.2} parent=5 // pred_fallthru
      _
    %p591 = scmp.le.s32.totalorder 2, %s13
    // Predicated region
    $region57: #{spatial_nl.2} parent=5 // pred_check
      %p592 = pneg %p591
    $region58: #{spatial_nl.2} parent=5 // pred_check_branch
      %594 = sbr.rel (%p592) target = $region60
    $region59: #{spatial_nl.2} parent=5 // pred_region
      %s595 = ssub.s32 %s13, 2
      // Predicated region
      $region61: #{spatial_nl.2} parent=59 // pred_check
        %p596 = pneg %p150
      $region62: #{spatial_nl.2} parent=59 // pred_check_branch
        %598 = sbr.rel (%p596) target = $region64
      $region63: #{spatial_nl.2} parent=59 // pred_region
        %p599 = scmp.lt.s32.totalorder %s24, 1
        %s600 = scalar_select %p599, %s24, 1
        %s601 = smul.addr %s600, 2
        %s602 = scalar_lea.vmem %s4, %s601
      $region64: #{spatial_nl.2} parent=59 // pred_fallthru
        _
      // Predicated region
      $region65: #{spatial_nl.2} parent=59 // pred_check
        %p603 = pneg %p176
      $region66: #{spatial_nl.2} parent=59 // pred_check_branch
        %605 = sbr.rel (%p603) target = $region68
      $region67: #{spatial_nl.2} parent=59 // pred_region
        %p606 = scmp.lt.s32.totalorder %s24, 1
        %s607 = scalar_select %p606, %s24, 1
        %s608 = smul.addr %s607, 4
        %s609 = scalar_lea.vmem %s5, %s608
      $region68: #{spatial_nl.2} parent=59 // pred_fallthru
        _
      // Predicated region
      $region69: #{spatial_nl.2} parent=59 // pred_check
        %p610 = pneg %p202
      $region70: #{spatial_nl.2} parent=59 // pred_check_branch
        %612 = sbr.rel (%p610) target = $region72
      $region71: #{spatial_nl.2} parent=59 // pred_region
        %p613 = scmp.lt.s32.totalorder %s24, 1
        %s614 = scalar_select %p613, %s24, 1
        %s615 = smul.addr %s614, 4
        %s616 = scalar_lea.vmem %s6, %s615
      $region72: #{spatial_nl.2} parent=59 // pred_fallthru
        _
    $region60: #{spatial_nl.2} parent=5 // pred_fallthru
      _
  $region6: #{spatial_nl.2} parent=0 // loop_footer
    %s17 = sadd.s32 1, %s13
  $region7: #{spatial_nl.2} parent=0 // loop_footer_branch
    %12 = sbr.rel target = $region3
  $region8: #{spatial_nl.2} parent=0 // loop_exit
    _

</llo_original>
